<compile_context>
chip_gen: v7x
topology: tpu7x:2x2x1
jax: 0.10.0
libtpu: 0.0.40
codegen_flags: <defaults>
</compile_context>

<pallas_src>
import jax
import jax.numpy as jnp
from jax.experimental import pallas as pl
from jax.experimental.pallas import tpu as pltpu

F_IN, H1, H2 = 384, 128, 64
H2_PAD = 128  # fc2 output padded 64 -> 128 so every vector op is full-width


def _round_up(x, m):
    return ((x + m - 1) // m) * m


def mlp_kernel(x_ref, w1_ref, b1_ref, w2_ref, b2_ref, w3_ref, b3_ref, o_ref):
    # In-kernel cast to bf16 (VPU, hidden under the HBM-bound x DMA).
    x = x_ref[...].astype(jnp.bfloat16)
    # fc1: bf16 MXU matmul, f32 accumulation; bias + ReLU in f32.
    h1 = jnp.dot(x, w1_ref[...], preferred_element_type=jnp.float32)
    h1 = jnp.maximum(h1 + b1_ref[...], 0.0)
    # fc2 (padded to 128 outputs): full lane utilisation for bias/ReLU and fc3.
    h2 = jnp.dot(h1.astype(jnp.bfloat16), w2_ref[...],
                 preferred_element_type=jnp.float32)
    h2 = jnp.maximum(h2 + b2_ref[...], 0.0)
    # fc3 has N=1 -> compute it as (1,128) . (TB,128)^T = (1, TB) on the MXU
    # (plenty of MXU slack) so the result is a lane-dense row; padded lanes of
    # h2 are exactly zero (zero-padded w2/b2) so they contribute nothing.
    h3 = jax.lax.dot_general(
        w3_ref[...], h2,
        dimension_numbers=(((1,), (1,)), ((), ())),
        preferred_element_type=jnp.float32,
    )                                   # (1, TB)
    h3 = h3 + b3_ref[...]               # (1,1) broadcast over lanes
    o_ref[0] = h3.astype(o_ref.dtype)   # o_ref block is (1, 1, TB)


def simple_model_forward(x, kparams, *, tb_max=2048):
    """x: [B, 384] float (f32 ok; cast to bf16 happens in-kernel).
    kparams: output of prepare_kernel_params(). Returns [B, 1] float32."""
    B = x.shape[0]
    w1, b1, w2, b2, w3, b3 = (kparams[k] for k in ("w1", "b1", "w2", "b2", "w3", "b3"))

    # Batch tile: multiple of 16 (bf16 sublane packing), capped at tb_max, and
    # sized so the grid has >= 2 steps when B allows it (v7x megacore).
    TB = min(tb_max, max(16, _round_up(pl.cdiv(B, 2), 16)))
    num_tiles = pl.cdiv(B, TB)  # ragged tail handled by Pallas block padding

    def rep(shape):  # full-array, VMEM-resident across all grid steps
        return pl.BlockSpec(shape, lambda i: (0,) * len(shape))

    weight_bytes = sum(int(a.size) * a.dtype.itemsize for a in (w1, b1, w2, b2, w3, b3))
    rows = num_tiles * TB
    cost = pl.CostEstimate(
        flops=2 * rows * (F_IN * H1 + H1 * H2_PAD + H2_PAD),
        transcendentals=0,
        bytes_accessed=rows * F_IN * x.dtype.itemsize + rows * 4 + weight_bytes,
    )

    out = pl.pallas_call(
        mlp_kernel,
        out_shape=jax.ShapeDtypeStruct((num_tiles, 1, TB), jnp.float32),
        grid=(num_tiles,),
        in_specs=[
            pl.BlockSpec((TB, F_IN), lambda i: (i, 0)),
            rep(w1.shape), rep(b1.shape),
            rep(w2.shape), rep(b2.shape),
            rep(w3.shape), rep(b3.shape),
        ],
        out_specs=pl.BlockSpec((1, 1, TB), lambda i: (i, 0, 0)),
        compiler_params=pltpu.CompilerParams(dimension_semantics=("parallel",)),
        cost_estimate=cost,
    )(x, w1, b1, w2, b2, w3, b3)
    # (num_tiles, 1, TB) -> (B, 1); tail garbage rows (if any) are sliced off.
    return out.reshape(num_tiles * TB, 1)[:B]


def init_params(key):
    """Logical params matching nn.Linear shapes (stored transposed, f32)."""
    ks = jax.random.split(key, 6)

    def linear(kw, kb, fan_in, fan_out):
        bound = 1.0 / jnp.sqrt(fan_in)
        w_t = jax.random.uniform(kw, (fan_in, fan_out), jnp.float32, -bound, bound)
        b = jax.random.uniform(kb, (1, fan_out), jnp.float32, -bound, bound)
        return w_t, b

    w1, b1 = linear(ks[0], ks[1], F_IN, H1)
    w2, b2 = linear(ks[2], ks[3], H1, H2)
    w3, b3 = linear(ks[4], ks[5], H2, 1)
    return {"w1": w1, "b1": b1, "w2": w2, "b2": b2, "w3": w3, "b3": b3}


def prepare_kernel_params(p):
    """Pad fc2/fc3 to 128 lanes; cast MXU weights to bf16; biases stay f32."""
    w2_pad = jnp.zeros((H1, H2_PAD), jnp.float32).at[:, :H2].set(p["w2"])
    b2_pad = jnp.zeros((1, H2_PAD), jnp.float32).at[:, :H2].set(p["b2"])
    w3_row = jnp.zeros((1, H2_PAD), jnp.float32).at[:, :H2].set(p["w3"][:, 0][None, :])
    return {
        "w1": p["w1"].astype(jnp.bfloat16),   # (384, 128) bf16
        "b1": p["b1"],                        # (1, 128)   f32
        "w2": w2_pad.astype(jnp.bfloat16),    # (128, 128) bf16 (cols 64: zero)
        "b2": b2_pad,                         # (1, 128)   f32  (cols 64: zero)
        "w3": w3_row,                         # (1, 128)   f32  (cols 64: zero)
        "b3": p["b3"],                        # (1, 1)     f32
    }


def reference_forward(x, p):
    h1 = jnp.maximum(x @ p["w1"] + p["b1"], 0.0)
    h2 = jnp.maximum(h1 @ p["w2"] + p["b2"], 0.0)
    return h2 @ p["w3"] + p["b3"]


if __name__ == "__main__":
    key = jax.random.PRNGKey(0)
    k_params, k_x1, k_x2 = jax.random.split(key, 3)

    params = init_params(k_params)
    kparams = prepare_kernel_params(params)

    # Small demo batch (single tile).
    batch = 8
    x = jax.random.normal(k_x1, (batch, F_IN), jnp.float32)
    out = jax.block_until_ready(simple_model_forward(x, kparams))
    ref = reference_forward(x, params)
    assert out.shape == (batch, 1)
    # bf16 matmul weights/inputs -> relaxed tolerance vs. f32 reference.
    assert jnp.max(jnp.abs(out - ref)) < 5e-2, "mismatch vs reference (batch=8)"

    # Exercise the multi-tile grid + ragged-tail path (B=20 -> TB=16, 2 steps,
    # last tile only partially valid; handled in-kernel, no wrapper pad).
    batch2 = 20
    x2 = jax.random.normal(k_x2, (batch2, F_IN), jnp.float32)
    out2 = jax.block_until_ready(simple_model_forward(x2, kparams))
    ref2 = reference_forward(x2, params)
    assert out2.shape == (batch2, 1)
    assert jnp.max(jnp.abs(out2 - ref2)) < 5e-2, "mismatch vs reference (batch=20)"

    print("KERNEL_OK")
</pallas_src>

<mosaic_0001>
module attributes {stable_mosaic.version = 11 : i64} {
  func.func @mlp_kernel(%arg0: i32, %arg1: memref<16x384xf32, #tpu.memory_space<vmem>>, %arg2: memref<384x128xbf16, #tpu.memory_space<vmem>>, %arg3: memref<1x128xf32, #tpu.memory_space<vmem>>, %arg4: memref<128x128xbf16, #tpu.memory_space<vmem>>, %arg5: memref<1x128xf32, #tpu.memory_space<vmem>>, %arg6: memref<1x128xf32, #tpu.memory_space<vmem>>, %arg7: memref<1x1xf32, #tpu.memory_space<vmem>>, %arg8: memref<1x1x16xf32, #tpu.memory_space<vmem>>) attributes {dimension_semantics = [#tpu.dimension_semantics<parallel>], iteration_bounds = array<i64: 1>, scalar_prefetch = 0 : i64, scratch_operands = 0 : i64, tpu.core_type = #tpu.core_type<tc>, window_params = [{transform_indices = @transform_0, window_bounds = array<i64: 16, 384>}, {pipeline_mode = #tpu.pipeline_mode<synchronous>, transform_indices = @transform_1, window_bounds = array<i64: 384, 128>}, {pipeline_mode = #tpu.pipeline_mode<synchronous>, transform_indices = @transform_2, window_bounds = array<i64: 1, 128>}, {pipeline_mode = #tpu.pipeline_mode<synchronous>, transform_indices = @transform_3, window_bounds = array<i64: 128, 128>}, {pipeline_mode = #tpu.pipeline_mode<synchronous>, transform_indices = @transform_4, window_bounds = array<i64: 1, 128>}, {pipeline_mode = #tpu.pipeline_mode<synchronous>, transform_indices = @transform_5, window_bounds = array<i64: 1, 128>}, {pipeline_mode = #tpu.pipeline_mode<synchronous>, transform_indices = @transform_6, window_bounds = array<i64: 1, 1>}, {transform_indices = @transform_7, window_bounds = array<i64: 1, 1, 16>}]} {
    %c0 = arith.constant 0 : index
    %c0_0 = arith.constant 0 : index
    %0 = vector.load %arg1[%c0, %c0_0] : memref<16x384xf32, #tpu.memory_space<vmem>>, vector<16x384xf32>
    %1 = arith.truncf %0 : vector<16x384xf32> to vector<16x384xbf16>
    %c0_1 = arith.constant 0 : index
    %c0_2 = arith.constant 0 : index
    %2 = vector.load %arg2[%c0_1, %c0_2] : memref<384x128xbf16, #tpu.memory_space<vmem>>, vector<384x128xbf16>
    %cst = arith.constant dense<0.000000e+00> : vector<16x128xf32>
    %3 = tpu.matmul %1, %2, %cst {dimension_numbers = #tpu.dot_dimension_numbers<[1], [0], [0], [1], [0, 0, 1, 1], [], []>} : vector<16x384xbf16>, vector<384x128xbf16>, vector<16x128xf32> -> vector<16x128xf32>
    %c0_3 = arith.constant 0 : index
    %c0_4 = arith.constant 0 : index
    %4 = vector.load %arg3[%c0_3, %c0_4] : memref<1x128xf32, #tpu.memory_space<vmem>>, vector<1x128xf32>
    %5 = vector.broadcast %4 : vector<1x128xf32> to vector<16x128xf32>
    %6 = arith.addf %3, %5 : vector<16x128xf32>
    %cst_5 = arith.constant 0.000000e+00 : f32
    %7 = vector.broadcast %cst_5 : f32 to vector<16x128xf32>
    %8 = arith.maximumf %6, %7 : vector<16x128xf32>
    %9 = arith.truncf %8 : vector<16x128xf32> to vector<16x128xbf16>
    %c0_6 = arith.constant 0 : index
    %c0_7 = arith.constant 0 : index
    %10 = vector.load %arg4[%c0_6, %c0_7] : memref<128x128xbf16, #tpu.memory_space<vmem>>, vector<128x128xbf16>
    %cst_8 = arith.constant dense<0.000000e+00> : vector<16x128xf32>
    %11 = tpu.matmul %9, %10, %cst_8 {dimension_numbers = #tpu.dot_dimension_numbers<[1], [0], [0], [1], [0, 0, 1, 1], [], []>} : vector<16x128xbf16>, vector<128x128xbf16>, vector<16x128xf32> -> vector<16x128xf32>
    %c0_9 = arith.constant 0 : index
    %c0_10 = arith.constant 0 : index
    %12 = vector.load %arg5[%c0_9, %c0_10] : memref<1x128xf32, #tpu.memory_space<vmem>>, vector<1x128xf32>
    %13 = vector.broadcast %12 : vector<1x128xf32> to vector<16x128xf32>
    %14 = arith.addf %11, %13 : vector<16x128xf32>
    %cst_11 = arith.constant 0.000000e+00 : f32
    %15 = vector.broadcast %cst_11 : f32 to vector<16x128xf32>
    %16 = arith.maximumf %14, %15 : vector<16x128xf32>
    %c0_12 = arith.constant 0 : index
    %c0_13 = arith.constant 0 : index
    %17 = vector.load %arg6[%c0_12, %c0_13] : memref<1x128xf32, #tpu.memory_space<vmem>>, vector<1x128xf32>
    %cst_14 = arith.constant dense<0.000000e+00> : vector<1x16xf32>
    %18 = tpu.matmul %17, %16, %cst_14 {dimension_numbers = #tpu.dot_dimension_numbers<[1], [1], [0], [0], [0, 0, 1, 0], [], []>} : vector<1x128xf32>, vector<16x128xf32>, vector<1x16xf32> -> vector<1x16xf32>
    %c0_15 = arith.constant 0 : index
    %c0_16 = arith.constant 0 : index
    %19 = vector.load %arg7[%c0_15, %c0_16] : memref<1x1xf32, #tpu.memory_space<vmem>>, vector<1x1xf32>
    %20 = vector.broadcast %19 : vector<1x1xf32> to vector<1x16xf32>
    %21 = arith.addf %18, %20 : vector<1x16xf32>
    %c0_17 = arith.constant 0 : index
    %c0_18 = arith.constant 0 : index
    %c0_19 = arith.constant 0 : index
    %22 = vector.load %arg8[%c0_17, %c0_18, %c0_19] : memref<1x1x16xf32, #tpu.memory_space<vmem>>, vector<1x1x16xf32>
    %23 = vector.shape_cast %22 : vector<1x1x16xf32> to vector<1x16xf32>
    %24 = vector.shape_cast %21 : vector<1x16xf32> to vector<1x1x16xf32>
    tpu.vector_store %arg8[%c0_17, %c0_18, %c0_19], %24 {strides = array<i32>} : memref<1x1x16xf32, #tpu.memory_space<vmem>>, vector<1x1x16xf32>,
    return
  }
  func.func @transform_0(%arg0: i32) -> (i32, i32) {
    %c0_i32 = arith.constant 0 : i32
    %c0_i32_0 = arith.constant 0 : i32
    return %arg0, %c0_i32 : i32, i32
  }
  func.func @transform_1(%arg0: i32) -> (i32, i32) {
    %c0_i32 = arith.constant 0 : i32
    %c0_i32_0 = arith.constant 0 : i32
    %c0_i32_1 = arith.constant 0 : i32
    return %c0_i32, %c0_i32_0 : i32, i32
  }
  func.func @transform_2(%arg0: i32) -> (i32, i32) {
    %c0_i32 = arith.constant 0 : i32
    %c0_i32_0 = arith.constant 0 : i32
    %c0_i32_1 = arith.constant 0 : i32
    return %c0_i32, %c0_i32_0 : i32, i32
  }
  func.func @transform_3(%arg0: i32) -> (i32, i32) {
    %c0_i32 = arith.constant 0 : i32
    %c0_i32_0 = arith.constant 0 : i32
    %c0_i32_1 = arith.constant 0 : i32
    return %c0_i32, %c0_i32_0 : i32, i32
  }
  func.func @transform_4(%arg0: i32) -> (i32, i32) {
    %c0_i32 = arith.constant 0 : i32
    %c0_i32_0 = arith.constant 0 : i32
    %c0_i32_1 = arith.constant 0 : i32
    return %c0_i32, %c0_i32_0 : i32, i32
  }
  func.func @transform_5(%arg0: i32) -> (i32, i32) {
    %c0_i32 = arith.constant 0 : i32
    %c0_i32_0 = arith.constant 0 : i32
    %c0_i32_1 = arith.constant 0 : i32
    return %c0_i32, %c0_i32_0 : i32, i32
  }
  func.func @transform_6(%arg0: i32) -> (i32, i32) {
    %c0_i32 = arith.constant 0 : i32
    %c0_i32_0 = arith.constant 0 : i32
    %c0_i32_1 = arith.constant 0 : i32
    return %c0_i32, %c0_i32_0 : i32, i32
  }
  func.func @transform_7(%arg0: i32) -> (i32, i32, i32) {
    %c0_i32 = arith.constant 0 : i32
    %c0_i32_0 = arith.constant 0 : i32
    %c0_i32_1 = arith.constant 0 : i32
    return %arg0, %c0_i32, %c0_i32_0 : i32, i32, i32
  }
}

</mosaic_0001>

<llo_original>
// kernel: tpu_custom_call.1
$region0: #{tpu_custom_call.1}
  #allocation0 [shape = 'u32[]', space=smem, size = 0x4, offset = 0x4, fixed_abs, tag = 'smem constant byte address 0x4 - core index']
  #allocation1 [shape = 'u32[144,128]{1,0:T(1,128)}', space=vmem, size = 0x12000, scoped, tag = 'internal scratch']
  #allocation2 [shape = 'f32[1,1]{1,0:T(1,128)S(1)}', space=vmem, size = 0x200, scoped, tag = 'scoped memory for tpu_custom_call.1']
  %s0 = inlined_call_operand.hbm [shape: f32[8,384], index: 0, kind: input, shape index: {}]
  %s1 = inlined_call_operand.hbm [shape: bf16[384,128], index: 1, kind: input, shape index: {}]
  %s2 = inlined_call_operand.vmem [shape: f32[1,128], index: 2, kind: input, shape index: {}]
  %s3 = inlined_call_operand.hbm [shape: bf16[128,128], index: 3, kind: input, shape index: {}]
  %s4 = inlined_call_operand.vmem [shape: f32[1,128], index: 4, kind: input, shape index: {}]
  %s5 = inlined_call_operand.vmem [shape: f32[1,128], index: 5, kind: input, shape index: {}]
  %s6 = inlined_call_operand.<no memory space> [shape: f32[1,1], index: 6, kind: input, shape index: {}]
  %s7 = inlined_call_operand.hbm [shape: f32[1,1,16], index: 7, kind: output, shape index: {}]
  %s8 = sld [smem:[#allocation0]]
  $region50: #{tpu_custom_call.1} parent=0
    _
  %s10 = ssub.s32 1, %s8
  %s11 = scalar_select 0, %s10, %s8
  %v12 = vstv %s6
  %13 = vst [vmem:[#allocation2] sm:$0x1] %v12
  $region1: #{tpu_custom_call.1} parent=0
    #allocation3 [shape = 'u8[24576]{0}', space=vmem, size = 0x6000, scoped, tag = 'input window, operand 0, single buffered']
    #allocation4 [shape = 's32[1]{0}', space=sflag, size = 0x4, scoped, tag = 'scoped memory for tpu_custom_call.1']
    #allocation5 [shape = 's32[1]{0}', space=sflag, size = 0x4, scoped, tag = 'scoped memory for tpu_custom_call.1']
    #allocation6 [shape = 'u8[98304]{0}', space=vmem, size = 0x18000, scoped, tag = 'input window, operand 1, single buffered']
    #allocation7 [shape = 's32[1]{0}', space=sflag, size = 0x4, scoped, tag = 'scoped memory for tpu_custom_call.1']
    #allocation8 [shape = 'u8[32768]{0}', space=vmem, size = 0x8000, scoped, tag = 'input window, operand 3, single buffered']
    #allocation9 [shape = 'u8[512]{0}', space=vmem, size = 0x400, scoped, tag = 'output window, operand 0, single buffered']
    %14 = vsyncpa [#allocation4], 0
    %15 = vsyncpa [#allocation7], 0
    %16 = vsyncpa [#allocation5], 0
    // Predicated region
    $region2: #{tpu_custom_call.1} parent=1 // pred_check
      _
    $region3: #{tpu_custom_call.1} parent=1 // pred_check_branch
      %18 = sbr.rel (0) target = $region5
    $region4: #{tpu_custom_call.1} parent=1 // pred_region
      %s20 = ssub.s32 768, 384
      %21 = vsyncadd [#allocation4], %s20
      %s22 = sshll.u32 [#allocation3], 4
      %s23 = int_to_ptr.vmem [resolvable:$true] %s22
      %28 = dma.hbm_to_vmem [thread:$0]  %s0, 384, %s23, [#allocation4], 384, 384, 24
    $region5: #{tpu_custom_call.1} parent=1 // pred_fallthru
      _
    // Predicated region
    $region6: #{tpu_custom_call.1} parent=1 // pred_check
      _
    $region7: #{tpu_custom_call.1} parent=1 // pred_check_branch
      %30 = sbr.rel (0) target = $region9
    $region8: #{tpu_custom_call.1} parent=1 // pred_region
      %s32 = ssub.s32 3072, 3072
      %33 = vsyncadd [#allocation7], %s32
      %s34 = sshll.u32 [#allocation6], 4
      %s35 = int_to_ptr.vmem [resolvable:$true] %s34
      %40 = dma.hbm_to_vmem [thread:$0]  %s1, 3072, %s35, [#allocation7], 64, 64, 4
    $region9: #{tpu_custom_call.1} parent=1 // pred_fallthru
      _
    // Predicated region
    $region10: #{tpu_custom_call.1} parent=1 // pred_check
      _
    $region11: #{tpu_custom_call.1} parent=1 // pred_check_branch
      %42 = sbr.rel (0) target = $region13
    $region12: #{tpu_custom_call.1} parent=1 // pred_region
      _
    $region13: #{tpu_custom_call.1} parent=1 // pred_fallthru
      _
    // Predicated region
    $region14: #{tpu_custom_call.1} parent=1 // pred_check
      _
    $region15: #{tpu_custom_call.1} parent=1 // pred_check_branch
      %44 = sbr.rel (0) target = $region17
    $region16: #{tpu_custom_call.1} parent=1 // pred_region
      %s46 = ssub.s32 1024, 1024
      %47 = vsyncadd [#allocation7], %s46
      %s48 = sshll.u32 [#allocation8], 4
      %s49 = int_to_ptr.vmem [resolvable:$true] %s48
      %54 = dma.hbm_to_vmem [thread:$0]  %s3, 1024, %s49, [#allocation7], 64, 64, 4
    $region17: #{tpu_custom_call.1} parent=1 // pred_fallthru
      _
    // Predicated region
    $region18: #{tpu_custom_call.1} parent=1 // pred_check
      _
    $region19: #{tpu_custom_call.1} parent=1 // pred_check_branch
      %56 = sbr.rel (0) target = $region21
    $region20: #{tpu_custom_call.1} parent=1 // pred_region
      _
    $region21: #{tpu_custom_call.1} parent=1 // pred_fallthru
      _
    // Predicated region
    $region22: #{tpu_custom_call.1} parent=1 // pred_check
      _
    $region23: #{tpu_custom_call.1} parent=1 // pred_check_branch
      %58 = sbr.rel (0) target = $region25
    $region24: #{tpu_custom_call.1} parent=1 // pred_region
      _
    $region25: #{tpu_custom_call.1} parent=1 // pred_fallthru
      _
    // Predicated region
    $region26: #{tpu_custom_call.1} parent=1 // pred_check
      _
    $region27: #{tpu_custom_call.1} parent=1 // pred_check_branch
      %60 = sbr.rel (0) target = $region29
    $region28: #{tpu_custom_call.1} parent=1 // pred_region
      _
    $region29: #{tpu_custom_call.1} parent=1 // pred_fallthru
      _
    // Predicated region
    $region30: #{tpu_custom_call.1} parent=1 // pred_check
      _
    $region31: #{tpu_custom_call.1} parent=1 // pred_check_branch
      %62 = sbr.rel (0) target = $region33
    $region32: #{tpu_custom_call.1} parent=1 // pred_region
      %63 = dma.done [#allocation4], 768
    $region33: #{tpu_custom_call.1} parent=1 // pred_fallthru
      _
    // Predicated region
    $region34: #{tpu_custom_call.1} parent=1 // pred_check
      _
    $region35: #{tpu_custom_call.1} parent=1 // pred_check_branch
      %65 = sbr.rel (0) target = $region37
    $region36: #{tpu_custom_call.1} parent=1 // pred_region
      %66 = dma.done [#allocation7], 3072
    $region37: #{tpu_custom_call.1} parent=1 // pred_fallthru
      _
    // Predicated region
    $region38: #{tpu_custom_call.1} parent=1 // pred_check
      _
    $region39: #{tpu_custom_call.1} parent=1 // pred_check_branch
      %68 = sbr.rel (0) target = $region41
    $region40: #{tpu_custom_call.1} parent=1 // pred_region
      %69 = dma.done [#allocation7], 1024
    $region41: #{tpu_custom_call.1} parent=1 // pred_fallthru
      _
    %v71 = vld [vmem:[#allocation3] sm:$0xff]
    %v72 = vld [vmem:[#allocation3 + $0x8] sm:$0xff]
    %v73 = vld [vmem:[#allocation3 + $0x10] sm:$0xff]
    %v74 = vld [vmem:[#allocation3 + $0x18] sm:$0xff]
    %v75 = vld [vmem:[#allocation3 + $0x20] sm:$0xff]
    %v76 = vld [vmem:[#allocation3 + $0x28] sm:$0xff]
    %v77 = vpack.c.bf16 %v74, %v71
    %v78 = vpack.c.bf16 %v75, %v72
    %v79 = vpack.c.bf16 %v76, %v73
    %v80 = vld [vmem:[#allocation6] sm:$0xf]
    %v81 = vld [vmem:[#allocation6 + $0x4] sm:$0xf]
    %v82 = vld [vmem:[#allocation6 + $0x8] sm:$0xf]
    %v83 = vld [vmem:[#allocation6 + $0xc] sm:$0xf]
    %v84 = vld [vmem:[#allocation6 + $0x10] sm:$0xf]
    %v85 = vld [vmem:[#allocation6 + $0x14] sm:$0xf]
    %v86 = vld [vmem:[#allocation6 + $0x18] sm:$0xf]
    %v87 = vld [vmem:[#allocation6 + $0x1c] sm:$0xf]
    %v88 = vld [vmem:[#allocation6 + $0x20] sm:$0xf]
    %v89 = vld [vmem:[#allocation6 + $0x24] sm:$0xf]
    %v90 = vld [vmem:[#allocation6 + $0x28] sm:$0xf]
    %v91 = vld [vmem:[#allocation6 + $0x2c] sm:$0xf]
    %v92 = vld [vmem:[#allocation6 + $0x30] sm:$0xf]
    %v93 = vld [vmem:[#allocation6 + $0x34] sm:$0xf]
    %v94 = vld [vmem:[#allocation6 + $0x38] sm:$0xf]
    %v95 = vld [vmem:[#allocation6 + $0x3c] sm:$0xf]
    %v96 = vld [vmem:[#allocation6 + $0x40] sm:$0xf]
    %v97 = vld [vmem:[#allocation6 + $0x44] sm:$0xf]
    %v98 = vld [vmem:[#allocation6 + $0x48] sm:$0xf]
    %v99 = vld [vmem:[#allocation6 + $0x4c] sm:$0xf]
    %v100 = vld [vmem:[#allocation6 + $0x50] sm:$0xf]
    %v101 = vld [vmem:[#allocation6 + $0x54] sm:$0xf]
    %v102 = vld [vmem:[#allocation6 + $0x58] sm:$0xf]
    %v103 = vld [vmem:[#allocation6 + $0x5c] sm:$0xf]
    %v104 = vld [vmem:[#allocation6 + $0x60] sm:$0xf]
    %v105 = vld [vmem:[#allocation6 + $0x64] sm:$0xf]
    %v106 = vld [vmem:[#allocation6 + $0x68] sm:$0xf]
    %v107 = vld [vmem:[#allocation6 + $0x6c] sm:$0xf]
    %v108 = vld [vmem:[#allocation6 + $0x70] sm:$0xf]
    %v109 = vld [vmem:[#allocation6 + $0x74] sm:$0xf]
    %v110 = vld [vmem:[#allocation6 + $0x78] sm:$0xf]
    %v111 = vld [vmem:[#allocation6 + $0x7c] sm:$0xf]
    %v112 = vld [vmem:[#allocation6 + $0x80] sm:$0xf]
    %v113 = vld [vmem:[#allocation6 + $0x84] sm:$0xf]
    %v114 = vld [vmem:[#allocation6 + $0x88] sm:$0xf]
    %v115 = vld [vmem:[#allocation6 + $0x8c] sm:$0xf]
    %v116 = vld [vmem:[#allocation6 + $0x90] sm:$0xf]
    %v117 = vld [vmem:[#allocation6 + $0x94] sm:$0xf]
    %v118 = vld [vmem:[#allocation6 + $0x98] sm:$0xf]
    %v119 = vld [vmem:[#allocation6 + $0x9c] sm:$0xf]
    %v120 = vld [vmem:[#allocation6 + $0xa0] sm:$0xf]
    %v121 = vld [vmem:[#allocation6 + $0xa4] sm:$0xf]
    %v122 = vld [vmem:[#allocation6 + $0xa8] sm:$0xf]
    %v123 = vld [vmem:[#allocation6 + $0xac] sm:$0xf]
    %v124 = vld [vmem:[#allocation6 + $0xb0] sm:$0xf]
    %v125 = vld [vmem:[#allocation6 + $0xb4] sm:$0xf]
    %v126 = vld [vmem:[#allocation6 + $0xb8] sm:$0xf]
    %v127 = vld [vmem:[#allocation6 + $0xbc] sm:$0xf]
    %v128 = vld [vmem:[%s2] sm:$0x1]
    %v130 = vlaneseq
    %v131 = vshrl.u32 %v130, 7
    %v132 = vsub.s32 0, %v131
    %v133 = vrot.slane %v128, %v132
    %v183 = vunpack.c.l.b16 %v80
    %v184 = vunpack.c.l.b16 %v81
    %v185 = vunpack.c.l.b16 %v82
    %v186 = vunpack.c.l.b16 %v83
    %v187 = vunpack.c.l.b16 %v84
    %v188 = vunpack.c.l.b16 %v85
    %v189 = vunpack.c.l.b16 %v86
    %v190 = vunpack.c.l.b16 %v87
    %v191 = vunpack.c.l.b16 %v88
    %v192 = vunpack.c.l.b16 %v89
    %v193 = vunpack.c.l.b16 %v90
    %v194 = vunpack.c.l.b16 %v91
    %v195 = vunpack.c.l.b16 %v92
    %v196 = vunpack.c.l.b16 %v93
    %v197 = vunpack.c.l.b16 %v94
    %v198 = vunpack.c.l.b16 %v95
    %v199 = vunpack.c.l.b16 %v96
    %v200 = vunpack.c.l.b16 %v97
    %v201 = vunpack.c.l.b16 %v98
    %v202 = vunpack.c.l.b16 %v99
    %v203 = vunpack.c.l.b16 %v100
    %v204 = vunpack.c.l.b16 %v101
    %v205 = vunpack.c.l.b16 %v102
    %v206 = vunpack.c.l.b16 %v103
    %v207 = vunpack.c.l.b16 %v104
    %v208 = vunpack.c.l.b16 %v105
    %v209 = vunpack.c.l.b16 %v106
    %v210 = vunpack.c.l.b16 %v107
    %v211 = vunpack.c.l.b16 %v108
    %v212 = vunpack.c.l.b16 %v109
    %v213 = vunpack.c.l.b16 %v110
    %v214 = vunpack.c.l.b16 %v111
    %v215 = vunpack.c.l.b16 %v112
    %v216 = vunpack.c.l.b16 %v113
    %v217 = vunpack.c.l.b16 %v114
    %v218 = vunpack.c.l.b16 %v115
    %v219 = vunpack.c.l.b16 %v116
    %v220 = vunpack.c.l.b16 %v117
    %v221 = vunpack.c.l.b16 %v118
    %v222 = vunpack.c.l.b16 %v119
    %v223 = vunpack.c.l.b16 %v120
    %v224 = vunpack.c.l.b16 %v121
    %v225 = vunpack.c.l.b16 %v122
    %v226 = vunpack.c.l.b16 %v123
    %v227 = vunpack.c.l.b16 %v124
    %v228 = vunpack.c.l.b16 %v125
    %v229 = vunpack.c.l.b16 %v126
    %v230 = vunpack.c.l.b16 %v127
    %v231 = vpack.c.b16 %v184, %v183
    %v232 = vpack.c.b16 %v186, %v185
    %v233 = vpack.c.b16 %v188, %v187
    %v234 = vpack.c.b16 %v190, %v189
    %v235 = vpack.c.b16 %v192, %v191
    %v236 = vpack.c.b16 %v194, %v193
    %v237 = vpack.c.b16 %v196, %v195
    %v238 = vpack.c.b16 %v198, %v197
    %v239 = vpack.c.b16 %v200, %v199
    %v240 = vpack.c.b16 %v202, %v201
    %v241 = vpack.c.b16 %v204, %v203
    %v242 = vpack.c.b16 %v206, %v205
    %v243 = vpack.c.b16 %v208, %v207
    %v244 = vpack.c.b16 %v210, %v209
    %v245 = vpack.c.b16 %v212, %v211
    %v246 = vpack.c.b16 %v214, %v213
    %v247 = vpack.c.b16 %v216, %v215
    %v248 = vpack.c.b16 %v218, %v217
    %v249 = vpack.c.b16 %v220, %v219
    %v250 = vpack.c.b16 %v222, %v221
    %v251 = vpack.c.b16 %v224, %v223
    %v252 = vpack.c.b16 %v226, %v225
    %v253 = vpack.c.b16 %v228, %v227
    %v254 = vpack.c.b16 %v230, %v229
    %279 = vmatprep.subr.bf16.mxu0 0
    %280 = vmatpush1.bf16.msra.mxu0 %v231
    %281 = vmatprep.subr.bf16.mxu0 0
    %282 = vmatpush1.bf16.msra.mxu0 %v232
    %283 = vmatprep.subr.bf16.mxu0 0
    %284 = vmatpush1.bf16.msra.mxu0 %v233
    %285 = vmatprep.subr.bf16.mxu0 0
    %286 = vmatpush1.bf16.msra.mxu0 %v234
    %287 = vmatprep.subr.bf16.mxu0 0
    %288 = vmatpush1.bf16.msra.mxu0 %v235
    %289 = vmatprep.subr.bf16.mxu0 0
    %290 = vmatpush1.bf16.msra.mxu0 %v236
    %291 = vmatprep.subr.bf16.mxu0 0
    %292 = vmatpush1.bf16.msra.mxu0 %v237
    %293 = vmatprep.subr.bf16.mxu0 0
    %294 = vmatpush1.bf16.msra.mxu0 %v238
    %295 = vmatprep.subr.bf16.mxu0 0
    %296 = vmatpush1.bf16.msra.mxu0 %v239
    %297 = vmatprep.subr.bf16.mxu0 0
    %298 = vmatpush1.bf16.msra.mxu0 %v240
    %299 = vmatprep.subr.bf16.mxu0 0
    %300 = vmatpush1.bf16.msra.mxu0 %v241
    %301 = vmatprep.subr.bf16.mxu0 0
    %302 = vmatpush1.bf16.msra.mxu0 %v242
    %303 = vmatprep.subr.bf16.mxu0 0
    %304 = vmatpush1.bf16.msra.mxu0 %v243
    %305 = vmatprep.subr.bf16.mxu0 0
    %306 = vmatpush1.bf16.msra.mxu0 %v244
    %307 = vmatprep.subr.bf16.mxu0 0
    %308 = vmatpush1.bf16.msra.mxu0 %v245
    %309 = vmatprep.subr.bf16.mxu0 0
    %310 = vmatpush1.bf16.msra.mxu0 %v246
    %311 = vmatprep.mubr.bf16.mxu0 %v78
    %312 = vmatmul.mubr.bf16.gmra.mrb[0].mxu0 %v77
    %v313 = vpop.f32.mrb[0].mxu0
    %v314 = vadd.f32 %v133, %v313
    %v315 = vpop.f32.mrb[0].mxu0
    %v316 = vpop.f32.mrb[0].mxu0
    %v317 = vadd.f32 %v133, %v316
    %v318 = vpop.f32.mrb[0].mxu0
    %319 = vdwg.mxu0
    %320 = vmatprep.subr.bf16.mxu0 0
    %321 = vmatpush1.bf16.msra.mxu0 %v247
    %322 = vmatprep.subr.bf16.mxu0 0
    %323 = vmatpush1.bf16.msra.mxu0 %v248
    %324 = vmatprep.subr.bf16.mxu0 0
    %325 = vmatpush1.bf16.msra.mxu0 %v249
    %326 = vmatprep.subr.bf16.mxu0 0
    %327 = vmatpush1.bf16.msra.mxu0 %v250
    %328 = vmatprep.subr.bf16.mxu0 0
    %329 = vmatpush1.bf16.msra.mxu0 %v251
    %330 = vmatprep.subr.bf16.mxu0 0
    %331 = vmatpush1.bf16.msra.mxu0 %v252
    %332 = vmatprep.subr.bf16.mxu0 0
    %333 = vmatpush1.bf16.msra.mxu0 %v253
    %334 = vmatprep.subr.bf16.mxu0 0
    %335 = vmatpush1.bf16.msra.mxu0 %v254
    %336 = vmatprep.subr.bf16.mxu0 0
    %337 = vmatpush1.bf16.msra.mxu0 0
    %338 = vmatprep.subr.bf16.mxu0 0
    %339 = vmatpush1.bf16.msra.mxu0 0
    %340 = vmatprep.subr.bf16.mxu0 0
    %341 = vmatpush1.bf16.msra.mxu0 0
    %342 = vmatprep.subr.bf16.mxu0 0
    %343 = vmatpush1.bf16.msra.mxu0 0
    %344 = vmatprep.subr.bf16.mxu0 0
    %345 = vmatpush1.bf16.msra.mxu0 0
    %346 = vmatprep.subr.bf16.mxu0 0
    %347 = vmatpush1.bf16.msra.mxu0 0
    %348 = vmatprep.subr.bf16.mxu0 0
    %349 = vmatpush1.bf16.msra.mxu0 0
    %350 = vmatprep.subr.bf16.mxu0 0
    %351 = vmatpush1.bf16.msra.mxu0 0
    %352 = vmatprep.mubr.bf16.mxu0 0
    %353 = vmatmul.mubr.bf16.gmra.mrb[0].mxu0 %v79
    %v354 = vpop.f32.mrb[0].mxu0
    %v355 = vadd.f32 %v314, %v354
    %v356 = vpop.f32.mrb[0].mxu0
    %v357 = vpop.f32.mrb[0].mxu0
    %v358 = vadd.f32 %v317, %v357
    %v359 = vpop.f32.mrb[0].mxu0
    %360 = vdwg.mxu0
    %v361 = vmax.f32 %v355, 0.0
    %v362 = vmax.f32 %v358, 0.0
    %v363 = vpack.c.bf16 %v362, %v361
    %v364 = vld [vmem:[#allocation8] sm:$0xf]
    %v365 = vld [vmem:[#allocation8 + $0x4] sm:$0xf]
    %v366 = vld [vmem:[#allocation8 + $0x8] sm:$0xf]
    %v367 = vld [vmem:[#allocation8 + $0xc] sm:$0xf]
    %v368 = vld [vmem:[#allocation8 + $0x10] sm:$0xf]
    %v369 = vld [vmem:[#allocation8 + $0x14] sm:$0xf]
    %v370 = vld [vmem:[#allocation8 + $0x18] sm:$0xf]
    %v371 = vld [vmem:[#allocation8 + $0x1c] sm:$0xf]
    %v372 = vld [vmem:[#allocation8 + $0x20] sm:$0xf]
    %v373 = vld [vmem:[#allocation8 + $0x24] sm:$0xf]
    %v374 = vld [vmem:[#allocation8 + $0x28] sm:$0xf]
    %v375 = vld [vmem:[#allocation8 + $0x2c] sm:$0xf]
    %v376 = vld [vmem:[#allocation8 + $0x30] sm:$0xf]
    %v377 = vld [vmem:[#allocation8 + $0x34] sm:$0xf]
    %v378 = vld [vmem:[#allocation8 + $0x38] sm:$0xf]
    %v379 = vld [vmem:[#allocation8 + $0x3c] sm:$0xf]
    %v380 = vld [vmem:[%s4] sm:$0x1]
    %v382 = vlaneseq
    %v383 = vshrl.u32 %v382, 7
    %v384 = vsub.s32 0, %v383
    %v385 = vrot.slane %v380, %v384
    %v403 = vunpack.c.l.b16 %v364
    %v404 = vunpack.c.l.b16 %v365
    %v405 = vunpack.c.l.b16 %v366
    %v406 = vunpack.c.l.b16 %v367
    %v407 = vunpack.c.l.b16 %v368
    %v408 = vunpack.c.l.b16 %v369
    %v409 = vunpack.c.l.b16 %v370
    %v410 = vunpack.c.l.b16 %v371
    %v411 = vunpack.c.l.b16 %v372
    %v412 = vunpack.c.l.b16 %v373
    %v413 = vunpack.c.l.b16 %v374
    %v414 = vunpack.c.l.b16 %v375
    %v415 = vunpack.c.l.b16 %v376
    %v416 = vunpack.c.l.b16 %v377
    %v417 = vunpack.c.l.b16 %v378
    %v418 = vunpack.c.l.b16 %v379
    %v419 = vpack.c.b16 %v404, %v403
    %v420 = vpack.c.b16 %v406, %v405
    %v421 = vpack.c.b16 %v408, %v407
    %v422 = vpack.c.b16 %v410, %v409
    %v423 = vpack.c.b16 %v412, %v411
    %v424 = vpack.c.b16 %v414, %v413
    %v425 = vpack.c.b16 %v416, %v415
    %v426 = vpack.c.b16 %v418, %v417
    %435 = vmatprep.subr.bf16.mxu0 0
    %436 = vmatpush1.bf16.msra.mxu0 %v419
    %437 = vmatprep.subr.bf16.mxu0 0
    %438 = vmatpush1.bf16.msra.mxu0 %v420
    %439 = vmatprep.subr.bf16.mxu0 0
    %440 = vmatpush1.bf16.msra.mxu0 %v421
    %441 = vmatprep.subr.bf16.mxu0 0
    %442 = vmatpush1.bf16.msra.mxu0 %v422
    %443 = vmatprep.subr.bf16.mxu0 0
    %444 = vmatpush1.bf16.msra.mxu0 %v423
    %445 = vmatprep.subr.bf16.mxu0 0
    %446 = vmatpush1.bf16.msra.mxu0 %v424
    %447 = vmatprep.subr.bf16.mxu0 0
    %448 = vmatpush1.bf16.msra.mxu0 %v425
    %449 = vmatprep.subr.bf16.mxu0 0
    %450 = vmatpush1.bf16.msra.mxu0 %v426
    %451 = vmatprep.subr.bf16.mxu0 0
    %452 = vmatpush1.bf16.msra.mxu0 0
    %453 = vmatprep.subr.bf16.mxu0 0
    %454 = vmatpush1.bf16.msra.mxu0 0
    %455 = vmatprep.subr.bf16.mxu0 0
    %456 = vmatpush1.bf16.msra.mxu0 0
    %457 = vmatprep.subr.bf16.mxu0 0
    %458 = vmatpush1.bf16.msra.mxu0 0
    %459 = vmatprep.subr.bf16.mxu0 0
    %460 = vmatpush1.bf16.msra.mxu0 0
    %461 = vmatprep.subr.bf16.mxu0 0
    %462 = vmatpush1.bf16.msra.mxu0 0
    %463 = vmatprep.subr.bf16.mxu0 0
    %464 = vmatpush1.bf16.msra.mxu0 0
    %465 = vmatprep.subr.bf16.mxu0 0
    %466 = vmatpush1.bf16.msra.mxu0 0
    %467 = vmatprep.mubr.bf16.mxu0 0
    %468 = vmatmul.mubr.bf16.gmra.mrb[0].mxu0 %v363
    %v469 = vpop.f32.mrb[0].mxu0
    %v470 = vadd.f32 %v385, %v469
    %v471 = vpop.f32.mrb[0].mxu0
    %v472 = vpop.f32.mrb[0].mxu0
    %v473 = vadd.f32 %v385, %v472
    %v474 = vpop.f32.mrb[0].mxu0
    %475 = vdwg.mxu0
    %v476 = vmax.f32 %v470, 0.0
    %v477 = vmax.f32 %v473, 0.0
    %v478 = vld [vmem:[%s5] sm:$0x1]
    %v479 = vld [vmem:[#allocation2] sm:$0x1]
    %481 = vset.pattern.permute.xlu0 0
    %482 = vperm.xlu0 %481, %v479
    %v483 = vpop.permute.xlu0 %482
    %v485 = vlaneseq
    %v486 = vshrl.u32 %v485, 7
    %v487 = vsub.s32 0, %v486
    %v488 = vrot.slane %v483, %v487
    %489 = vmatprep.subr.mxu0 0.0
    %490 = vmatpush1.xpose.msra.mxu0 %v476
    %491 = vmatprep.subr.mxu0 0.0
    %492 = vmatpush1.xpose.msra.mxu0 %v477
    %493 = vmatprep.subr.mxu0 0.0
    %494 = vmatpush1.xpose.msra.mxu0 0.0
    %495 = vmatprep.subr.mxu0 0.0
    %496 = vmatpush1.xpose.msra.mxu0 0.0
    %497 = vmatprep.subr.mxu0 0.0
    %498 = vmatpush1.xpose.msra.mxu0 0.0
    %499 = vmatprep.subr.mxu0 0.0
    %500 = vmatpush1.xpose.msra.mxu0 0.0
    %501 = vmatprep.subr.mxu0 0.0
    %502 = vmatpush1.xpose.msra.mxu0 0.0
    %503 = vmatprep.subr.mxu0 0.0
    %504 = vmatpush1.xpose.msra.mxu0 0.0
    %505 = vmatprep.subr.mxu0 0.0
    %506 = vmatpush1.xpose.msra.mxu0 0.0
    %507 = vmatprep.subr.mxu0 0.0
    %508 = vmatpush1.xpose.msra.mxu0 0.0
    %509 = vmatprep.subr.mxu0 0.0
    %510 = vmatpush1.xpose.msra.mxu0 0.0
    %511 = vmatprep.subr.mxu0 0.0
    %512 = vmatpush1.xpose.msra.mxu0 0.0
    %513 = vmatprep.subr.mxu0 0.0
    %514 = vmatpush1.xpose.msra.mxu0 0.0
    %515 = vmatprep.subr.mxu0 0.0
    %516 = vmatpush1.xpose.msra.mxu0 0.0
    %517 = vmatprep.subr.mxu0 0.0
    %518 = vmatpush1.xpose.msra.mxu0 0.0
    %519 = vmatprep.subr.mxu0 0.0
    %520 = vmatpush1.xpose.msra.mxu0 0.0
    %521 = vmatprep.subr.mxu0 0.0
    %522 = vmatpush1.xpose.msra.mxu0 0.0
    %523 = vmatprep.subr.mxu0 0.0
    %524 = vmatpush1.xpose.msra.mxu0 0.0
    %525 = vmatprep.subr.mxu0 0.0
    %526 = vmatpush1.xpose.msra.mxu0 0.0
    %527 = vmatprep.subr.mxu0 0.0
    %528 = vmatpush1.xpose.msra.mxu0 0.0
    %529 = vmatprep.subr.mxu0 0.0
    %530 = vmatpush1.xpose.msra.mxu0 0.0
    %531 = vmatprep.subr.mxu0 0.0
    %532 = vmatpush1.xpose.msra.mxu0 0.0
    %533 = vmatprep.subr.mxu0 0.0
    %534 = vmatpush1.xpose.msra.mxu0 0.0
    %535 = vmatprep.subr.mxu0 0.0
    %536 = vmatpush1.xpose.msra.mxu0 0.0
    %537 = vmatprep.subr.mxu0 0.0
    %538 = vmatpush1.xpose.msra.mxu0 0.0
    %539 = vmatprep.subr.mxu0 0.0
    %540 = vmatpush1.xpose.msra.mxu0 0.0
    %541 = vmatprep.subr.mxu0 0.0
    %542 = vmatpush1.xpose.msra.mxu0 0.0
    %543 = vmatprep.subr.mxu0 0.0
    %544 = vmatpush1.xpose.msra.mxu0 0.0
    %545 = vmatprep.subr.mxu0 0.0
    %546 = vmatpush1.xpose.msra.mxu0 0.0
    %547 = vmatprep.subr.mxu0 0.0
    %548 = vmatpush1.xpose.msra.mxu0 0.0
    %549 = vmatprep.subr.mxu0 0.0
    %550 = vmatpush1.xpose.msra.mxu0 0.0
    %551 = vmatprep.subr.mxu0 0.0
    %552 = vmatpush1.xpose.msra.mxu0 0.0
    %553 = vmatprep.mubr.f32.mxu0 0.0
    %554 = vmatmul.mubr.f32.gmra.mrb[0].mxu0 %v478
    %v555 = vpop.f32.mrb[0].mxu0
    %v556 = vadd.f32 %v488, %v555
    %v557 = vpop.f32.mrb[0].mxu0
    %558 = vdwg.mxu0
    %vm559 = vcmask 122880
    %560 = vst.msk [vmem:[#allocation9] sm:$0x1] %vm559, %v556
    // Predicated region
    $region42: #{tpu_custom_call.1} parent=1 // pred_check
      _
    $region43: #{tpu_custom_call.1} parent=1 // pred_check_branch
      %562 = sbr.rel (0) target = $region45
    $region44: #{tpu_custom_call.1} parent=1 // pred_region
      %s564 = ssub.s32 16, 16
      %565 = vsyncadd [#allocation5], %s564
      %s567 = sshll.u32 [#allocation9], 4
      %s568 = int_to_ptr.vmem [resolvable:$true] %s567
      %570 = dma.vmem_to_hbm [thread:$0]  %s568, 16, %s7, [#allocation5]
    $region45: #{tpu_custom_call.1} parent=1 // pred_fallthru
      _
    // Predicated region
    $region46: #{tpu_custom_call.1} parent=1 // pred_check
      _
    $region47: #{tpu_custom_call.1} parent=1 // pred_check_branch
      %572 = sbr.rel (0) target = $region49
    $region48: #{tpu_custom_call.1} parent=1 // pred_region
      %573 = dma.done [#allocation5], 16
    $region49: #{tpu_custom_call.1} parent=1 // pred_fallthru
      _
    %574 = vsyncpa [#allocation4], 1
    %575 = vsyncpa [#allocation7], 1
    %576 = vsyncpa [#allocation5], 1

</llo_original>
